<compile_context>
chip_gen: v6e
topology: v6e:2x2x1
jax: 0.10.0
libtpu: 0.0.40
codegen_flags: <defaults>
</compile_context>

<pallas_src>
import functools

import jax
import jax.numpy as jnp
from jax import lax
from jax.experimental import pallas as pl
from jax.experimental.pallas import tpu as pltpu


# ----------------------------------------------------------------------------
# Pallas LayerNorm kernel
# ----------------------------------------------------------------------------
def layer_norm_kernel(*refs, eps, has_bias):
    """One grid step normalizes a (TR, D) row tile over its last axis.

    refs (has_bias=True):  x_ref (TR, D), w_ref (1, D), b_ref (1, D), o_ref (TR, D)
    refs (has_bias=False): x_ref (TR, D), w_ref (1, D),               o_ref (TR, D)
    """
    if has_bias:
        x_ref, w_ref, b_ref, o_ref = refs
    else:
        x_ref, w_ref, o_ref = refs
        b_ref = None

    x = x_ref[...].astype(jnp.float32)                       # (TR, D)
    mean = jnp.mean(x, axis=-1, keepdims=True)                # (TR, 1)
    xc = x - mean
    var = jnp.mean(xc * xc, axis=-1, keepdims=True)           # biased variance
    y = xc * lax.rsqrt(var + eps)                              # EUP rsqrt
    y = y * w_ref[...].astype(jnp.float32)
    if b_ref is not None:
        y = y + b_ref[...].astype(jnp.float32)
    o_ref[...] = y.astype(o_ref.dtype)


# ----------------------------------------------------------------------------
# Tile-size / VMEM-budget helpers
# ----------------------------------------------------------------------------
def _vmem_capacity_bytes():
    """Physical VMEM of the current chip; conservative 64 MiB fallback (v7x)."""
    try:
        return int(pltpu.get_tpu_info().vmem_capacity_bytes)
    except Exception:
        return 64 * 1024 * 1024


def _pick_row_tile(R, D, itemsize, vmem_cap):
    """Choose the row-tile size TR for a (R, D) stream.

    Hard cap : double-buffered input + output tiles (4 * TR * D * itemsize)
               must fit in ~60% of physical VMEM (headroom for scratch).
    Soft goal: ~4 MiB input tiles, but prefer >=8 grid steps (pipelining /
               dual-TC sharding) as long as tiles stay >= ~512 KiB.
    """
    row_bytes = D * itemsize
    tr_vmem = max(8, int(vmem_cap * 0.6) // (4 * row_bytes))   # hard VMEM cap
    tr_target = max(8, (4 << 20) // row_bytes)                  # ~4 MiB tile
    tr_floor = max(8, (512 << 10) // row_bytes)                 # >= ~512 KiB tile
    tr_8steps = -(-R // 8)                                      # ceil(R / 8)
    soft = min(tr_target, max(tr_8steps, tr_floor))
    tr = min(tr_vmem, soft)
    if tr >= R:
        return R                               # full extent (always legal)
    return max(8, (tr // 8) * 8)               # sublane-aligned row tile


# ----------------------------------------------------------------------------
# Wrapper
# ----------------------------------------------------------------------------
def layer_norm_pallas(x, weight, bias=None, *, eps=1e-5, block_rows=None):
    """LayerNorm over the last dim of x. x: (..., D); weight/bias: (D,)."""
    orig_shape = x.shape
    D = weight.shape[0]
    assert orig_shape[-1] == D, (orig_shape, D)

    R = x.size // D
    x2 = x.reshape(R, D)                       # contiguous collapse, no relayout
    itemsize = jnp.dtype(x.dtype).itemsize

    vmem_cap = _vmem_capacity_bytes()
    if block_rows is None:
        tr = _pick_row_tile(R, D, itemsize, vmem_cap)
    else:
        tr = R if block_rows >= R else max(8, (block_rows // 8) * 8)
    grid = (pl.cdiv(R, tr),)

    # VMEM limit sized to the actual pipelined footprint + headroom,
    # clamped to the chip (avoids v5e's 16 MiB scoped default shrinking tiles
    # and v7x's 64 MiB physical limit being blown for large D).
    tile_bytes = tr * D * itemsize
    footprint = 4 * tile_bytes + 2 * D * 4     # dbuf in+out tiles, gamma/beta
    vmem_limit = int(min(0.9 * vmem_cap, max(footprint + (4 << 20), 16 << 20)))

    has_bias = bias is not None
    kernel = functools.partial(layer_norm_kernel, eps=eps, has_bias=has_bias)

    in_specs = [
        pl.BlockSpec((tr, D), lambda i: (i, 0)),   # row tile of x
        pl.BlockSpec((1, D), lambda i: (0, 0)),    # gamma (resident)
    ]
    args = [x2, weight.reshape(1, D)]
    if has_bias:
        in_specs.append(pl.BlockSpec((1, D), lambda i: (0, 0)))  # beta (resident)
        args.append(bias.reshape(1, D))

    out = pl.pallas_call(
        kernel,
        out_shape=jax.ShapeDtypeStruct((R, D), x.dtype),
        grid=grid,
        in_specs=in_specs,
        out_specs=pl.BlockSpec((tr, D), lambda i: (i, 0)),
        compiler_params=pltpu.CompilerParams(
            dimension_semantics=("parallel",),     # rows are independent
            vmem_limit_bytes=vmem_limit,
        ),
    )(*args)
    return out.reshape(orig_shape)


# ----------------------------------------------------------------------------
# Pure-JAX reference (for correctness check)
# ----------------------------------------------------------------------------
def layer_norm_reference(x, weight, bias=None, eps=1e-5):
    mean = jnp.mean(x, axis=-1, keepdims=True)
    var = jnp.mean((x - mean) ** 2, axis=-1, keepdims=True)
    y = (x - mean) * lax.rsqrt(var + eps) * weight
    if bias is not None:
        y = y + bias
    return y


# ----------------------------------------------------------------------------
# Main
# ----------------------------------------------------------------------------
if __name__ == "__main__":
    eps = 1e-5
    key = jax.random.PRNGKey(0)
    kx, kw, kb, kx2 = jax.random.split(key, 4)

    # Case 1: 4-D activation tensor, lane-dense feature dim, auto tile size.
    b, l, n, D = 2, 8, 16, 256
    x = jax.random.normal(kx, (b, l, n, D), dtype=jnp.float32)
    weight = 1.0 + 0.1 * jax.random.normal(kw, (D,), dtype=jnp.float32)
    bias = 0.1 * jax.random.normal(kb, (D,), dtype=jnp.float32)

    fn = jax.jit(functools.partial(layer_norm_pallas, eps=eps))
    y = fn(x, weight, bias)
    jax.block_until_ready(y)
    assert y.shape == x.shape, y.shape
    ref = layer_norm_reference(x, weight, bias, eps)
    assert jnp.allclose(y, ref, atol=1e-5, rtol=1e-5)

    # Case 2: forced multi-step grid with a partial last tile (pipelined path).
    y_multi = jax.jit(
        functools.partial(layer_norm_pallas, eps=eps, block_rows=48)
    )(x, weight, bias)
    jax.block_until_ready(y_multi)
    assert jnp.allclose(y_multi, ref, atol=1e-5, rtol=1e-5)

    # Case 3: odd row count (< one tile) and bias=None (module's bias=False path).
    x_small = jax.random.normal(kx2, (3, 5, 4, D), dtype=jnp.float32)
    y_small = jax.jit(
        functools.partial(layer_norm_pallas, bias=None, eps=eps)
    )(x_small, weight)
    jax.block_until_ready(y_small)
    ref_small = layer_norm_reference(x_small, weight, None, eps)
    assert jnp.allclose(y_small, ref_small, atol=1e-5, rtol=1e-5)

    print("KERNEL_OK")
</pallas_src>

<mosaic_0001>
module attributes {stable_mosaic.version = 11 : i64} {
  func.func @layer_norm_kernel(%arg0: i32, %arg1: memref<256x256xf32, #tpu.memory_space<vmem>>, %arg2: memref<1x256xf32, #tpu.memory_space<vmem>>, %arg3: memref<1x256xf32, #tpu.memory_space<vmem>>, %arg4: memref<256x256xf32, #tpu.memory_space<vmem>>) attributes {dimension_semantics = [#tpu.dimension_semantics<parallel>], iteration_bounds = array<i64: 1>, scalar_prefetch = 0 : i64, scratch_operands = 0 : i64, tpu.core_type = #tpu.core_type<tc>, window_params = [{transform_indices = @transform_0, window_bounds = array<i64: 256, 256>}, {pipeline_mode = #tpu.pipeline_mode<synchronous>, transform_indices = @transform_1, window_bounds = array<i64: 1, 256>}, {pipeline_mode = #tpu.pipeline_mode<synchronous>, transform_indices = @transform_2, window_bounds = array<i64: 1, 256>}, {transform_indices = @transform_3, window_bounds = array<i64: 256, 256>}]} {
    %c0 = arith.constant 0 : index
    %c0_0 = arith.constant 0 : index
    %0 = vector.load %arg1[%c0, %c0_0] : memref<256x256xf32, #tpu.memory_space<vmem>>, vector<256x256xf32>
    %cst = arith.constant dense<0.000000e+00> : vector<256xf32>
    %1 = vector.multi_reduction <add>, %0, %cst [1] : vector<256x256xf32> to vector<256xf32>
    %2 = vector.shape_cast %1 : vector<256xf32> to vector<256x1xf32>
    %cst_1 = arith.constant 2.560000e+02 : f32
    %3 = vector.broadcast %cst_1 : f32 to vector<256x1xf32>
    %4 = arith.divf %2, %3 : vector<256x1xf32>
    %5 = vector.broadcast %4 : vector<256x1xf32> to vector<256x256xf32>
    %6 = arith.subf %0, %5 : vector<256x256xf32>
    %7 = arith.mulf %6, %6 : vector<256x256xf32>
    %cst_2 = arith.constant dense<0.000000e+00> : vector<256xf32>
    %8 = vector.multi_reduction <add>, %7, %cst_2 [1] : vector<256x256xf32> to vector<256xf32>
    %9 = vector.shape_cast %8 : vector<256xf32> to vector<256x1xf32>
    %cst_3 = arith.constant 2.560000e+02 : f32
    %10 = vector.broadcast %cst_3 : f32 to vector<256x1xf32>
    %11 = arith.divf %9, %10 : vector<256x1xf32>
    %cst_4 = arith.constant 9.99999974E-6 : f32
    %12 = vector.broadcast %cst_4 : f32 to vector<256x1xf32>
    %13 = arith.addf %11, %12 : vector<256x1xf32>
    %14 = math.rsqrt %13 : vector<256x1xf32>
    %15 = vector.broadcast %14 : vector<256x1xf32> to vector<256x256xf32>
    %16 = arith.mulf %6, %15 : vector<256x256xf32>
    %c0_5 = arith.constant 0 : index
    %c0_6 = arith.constant 0 : index
    %17 = vector.load %arg2[%c0_5, %c0_6] : memref<1x256xf32, #tpu.memory_space<vmem>>, vector<1x256xf32>
    %18 = vector.broadcast %17 : vector<1x256xf32> to vector<256x256xf32>
    %19 = arith.mulf %16, %18 : vector<256x256xf32>
    %c0_7 = arith.constant 0 : index
    %c0_8 = arith.constant 0 : index
    %20 = vector.load %arg3[%c0_7, %c0_8] : memref<1x256xf32, #tpu.memory_space<vmem>>, vector<1x256xf32>
    %21 = vector.broadcast %20 : vector<1x256xf32> to vector<256x256xf32>
    %22 = arith.addf %19, %21 : vector<256x256xf32>
    %c0_9 = arith.constant 0 : index
    %c0_10 = arith.constant 0 : index
    %23 = vector.load %arg4[%c0_9, %c0_10] : memref<256x256xf32, #tpu.memory_space<vmem>>, vector<256x256xf32>
    tpu.vector_store %arg4[%c0_9, %c0_10], %22 {strides = array<i32>} : memref<256x256xf32, #tpu.memory_space<vmem>>, vector<256x256xf32>,
    return
  }
  func.func @transform_0(%arg0: i32) -> (i32, i32) {
    %c0_i32 = arith.constant 0 : i32
    %c0_i32_0 = arith.constant 0 : i32
    return %arg0, %c0_i32 : i32, i32
  }
  func.func @transform_1(%arg0: i32) -> (i32, i32) {
    %c0_i32 = arith.constant 0 : i32
    %c0_i32_0 = arith.constant 0 : i32
    %c0_i32_1 = arith.constant 0 : i32
    return %c0_i32, %c0_i32_0 : i32, i32
  }
  func.func @transform_2(%arg0: i32) -> (i32, i32) {
    %c0_i32 = arith.constant 0 : i32
    %c0_i32_0 = arith.constant 0 : i32
    %c0_i32_1 = arith.constant 0 : i32
    return %c0_i32, %c0_i32_0 : i32, i32
  }
  func.func @transform_3(%arg0: i32) -> (i32, i32) {
    %c0_i32 = arith.constant 0 : i32
    %c0_i32_0 = arith.constant 0 : i32
    return %arg0, %c0_i32 : i32, i32
  }
}

</mosaic_0001>

<llo_original>
// kernel: layer_norm_pallas.1
$region0: #{layer_norm_pallas.1}
  #allocation0 [shape = 'u32[]', space=smem, size = 0x4, offset = 0x4, fixed_abs, tag = 'smem constant byte address 0x4 - core index']
  #allocation1 [shape = 'u32[144,128]{1,0:T(1,128)}', space=vmem, size = 0x12000, scoped, tag = 'internal scratch']
  %s0 = inlined_call_operand.hbm [shape: f32[256,256], index: 0, kind: input, shape index: {}]
  %s1 = inlined_call_operand.vmem [shape: f32[1,256], index: 1, kind: input, shape index: {}]
  %s2 = inlined_call_operand.vmem [shape: f32[1,256], index: 2, kind: input, shape index: {}]
  %s3 = inlined_call_operand.hbm [shape: f32[256,256], index: 3, kind: output, shape index: {}]
  %s4 = sld [smem:[#allocation0]]
  $region26: #{layer_norm_pallas.1} parent=0
    _
  %s6 = ssub.s32 1, %s4
  %s7 = scalar_select 0, %s6, %s4
  $region1: #{layer_norm_pallas.1} parent=0
    #allocation2 [shape = 'u8[262144]{0}', space=vmem, size = 0x40000, scoped, tag = 'input window, operand 0, single buffered']
    #allocation3 [shape = 's32[1]{0}', space=sflag, size = 0x4, scoped, tag = 'scoped memory for layer_norm_pallas.1']
    #allocation4 [shape = 's32[1]{0}', space=sflag, size = 0x4, scoped, tag = 'scoped memory for layer_norm_pallas.1']
    #allocation5 [shape = 'u8[262144]{0}', space=vmem, size = 0x40000, scoped, tag = 'output window, operand 0, single buffered']
    %8 = vsyncpa [#allocation3], 0
    %9 = vsyncpa [#allocation4], 0
    // Predicated region
    $region2: #{layer_norm_pallas.1} parent=1 // pred_check
      _
    $region3: #{layer_norm_pallas.1} parent=1 // pred_check_branch
      %11 = sbr.rel (0) target = $region5
    $region4: #{layer_norm_pallas.1} parent=1 // pred_region
      %s13 = ssub.s32 8192, 8192
      %14 = vsyncadd [#allocation3], %s13
      %s15 = sshll.u32 [#allocation2], 4
      %s16 = int_to_ptr.vmem [resolvable:$true] %s15
      %21 = dma.hbm_to_vmem [thread:$0]  %s0, 8192, %s16, [#allocation3], 256, 256, 16
    $region5: #{layer_norm_pallas.1} parent=1 // pred_fallthru
      _
    // Predicated region
    $region6: #{layer_norm_pallas.1} parent=1 // pred_check
      _
    $region7: #{layer_norm_pallas.1} parent=1 // pred_check_branch
      %23 = sbr.rel (0) target = $region9
    $region8: #{layer_norm_pallas.1} parent=1 // pred_region
      _
    $region9: #{layer_norm_pallas.1} parent=1 // pred_fallthru
      _
    // Predicated region
    $region10: #{layer_norm_pallas.1} parent=1 // pred_check
      _
    $region11: #{layer_norm_pallas.1} parent=1 // pred_check_branch
      %25 = sbr.rel (0) target = $region13
    $region12: #{layer_norm_pallas.1} parent=1 // pred_region
      _
    $region13: #{layer_norm_pallas.1} parent=1 // pred_fallthru
      _
    // Predicated region
    $region14: #{layer_norm_pallas.1} parent=1 // pred_check
      _
    $region15: #{layer_norm_pallas.1} parent=1 // pred_check_branch
      %27 = sbr.rel (0) target = $region17
    $region16: #{layer_norm_pallas.1} parent=1 // pred_region
      %28 = dma.done [#allocation3], 8192
    $region17: #{layer_norm_pallas.1} parent=1 // pred_fallthru
      _
    %v29 = vld [vmem:[#allocation2] sm:$0xff]
    %v30 = vld [vmem:[#allocation2 + $0x8] sm:$0xff]
    %v31 = vld [vmem:[#allocation2 + $0x10] sm:$0xff]
    %v32 = vld [vmem:[#allocation2 + $0x18] sm:$0xff]
    %v33 = vld [vmem:[#allocation2 + $0x20] sm:$0xff]
    %v34 = vld [vmem:[#allocation2 + $0x28] sm:$0xff]
    %v35 = vld [vmem:[#allocation2 + $0x30] sm:$0xff]
    %v36 = vld [vmem:[#allocation2 + $0x38] sm:$0xff]
    %v37 = vld [vmem:[#allocation2 + $0x40] sm:$0xff]
    %v38 = vld [vmem:[#allocation2 + $0x48] sm:$0xff]
    %v39 = vld [vmem:[#allocation2 + $0x50] sm:$0xff]
    %v40 = vld [vmem:[#allocation2 + $0x58] sm:$0xff]
    %v41 = vld [vmem:[#allocation2 + $0x60] sm:$0xff]
    %v42 = vld [vmem:[#allocation2 + $0x68] sm:$0xff]
    %v43 = vld [vmem:[#allocation2 + $0x70] sm:$0xff]
    %v44 = vld [vmem:[#allocation2 + $0x78] sm:$0xff]
    %v45 = vld [vmem:[#allocation2 + $0x80] sm:$0xff]
    %v46 = vld [vmem:[#allocation2 + $0x88] sm:$0xff]
    %v47 = vld [vmem:[#allocation2 + $0x90] sm:$0xff]
    %v48 = vld [vmem:[#allocation2 + $0x98] sm:$0xff]
    %v49 = vld [vmem:[#allocation2 + $0xa0] sm:$0xff]
    %v50 = vld [vmem:[#allocation2 + $0xa8] sm:$0xff]
    %v51 = vld [vmem:[#allocation2 + $0xb0] sm:$0xff]
    %v52 = vld [vmem:[#allocation2 + $0xb8] sm:$0xff]
    %v53 = vld [vmem:[#allocation2 + $0xc0] sm:$0xff]
    %v54 = vld [vmem:[#allocation2 + $0xc8] sm:$0xff]
    %v55 = vld [vmem:[#allocation2 + $0xd0] sm:$0xff]
    %v56 = vld [vmem:[#allocation2 + $0xd8] sm:$0xff]
    %v57 = vld [vmem:[#allocation2 + $0xe0] sm:$0xff]
    %v58 = vld [vmem:[#allocation2 + $0xe8] sm:$0xff]
    %v59 = vld [vmem:[#allocation2 + $0xf0] sm:$0xff]
    %v60 = vld [vmem:[#allocation2 + $0xf8] sm:$0xff]
    %v61 = vld [vmem:[#allocation2 + $0x100] sm:$0xff]
    %v62 = vld [vmem:[#allocation2 + $0x108] sm:$0xff]
    %v63 = vld [vmem:[#allocation2 + $0x110] sm:$0xff]
    %v64 = vld [vmem:[#allocation2 + $0x118] sm:$0xff]
    %v65 = vld [vmem:[#allocation2 + $0x120] sm:$0xff]
    %v66 = vld [vmem:[#allocation2 + $0x128] sm:$0xff]
    %v67 = vld [vmem:[#allocation2 + $0x130] sm:$0xff]
    %v68 = vld [vmem:[#allocation2 + $0x138] sm:$0xff]
    %v69 = vld [vmem:[#allocation2 + $0x140] sm:$0xff]
    %v70 = vld [vmem:[#allocation2 + $0x148] sm:$0xff]
    %v71 = vld [vmem:[#allocation2 + $0x150] sm:$0xff]
    %v72 = vld [vmem:[#allocation2 + $0x158] sm:$0xff]
    %v73 = vld [vmem:[#allocation2 + $0x160] sm:$0xff]
    %v74 = vld [vmem:[#allocation2 + $0x168] sm:$0xff]
    %v75 = vld [vmem:[#allocation2 + $0x170] sm:$0xff]
    %v76 = vld [vmem:[#allocation2 + $0x178] sm:$0xff]
    %v77 = vld [vmem:[#allocation2 + $0x180] sm:$0xff]
    %v78 = vld [vmem:[#allocation2 + $0x188] sm:$0xff]
    %v79 = vld [vmem:[#allocation2 + $0x190] sm:$0xff]
    %v80 = vld [vmem:[#allocation2 + $0x198] sm:$0xff]
    %v81 = vld [vmem:[#allocation2 + $0x1a0] sm:$0xff]
    %v82 = vld [vmem:[#allocation2 + $0x1a8] sm:$0xff]
    %v83 = vld [vmem:[#allocation2 + $0x1b0] sm:$0xff]
    %v84 = vld [vmem:[#allocation2 + $0x1b8] sm:$0xff]
    %v85 = vld [vmem:[#allocation2 + $0x1c0] sm:$0xff]
    %v86 = vld [vmem:[#allocation2 + $0x1c8] sm:$0xff]
    %v87 = vld [vmem:[#allocation2 + $0x1d0] sm:$0xff]
    %v88 = vld [vmem:[#allocation2 + $0x1d8] sm:$0xff]
    %v89 = vld [vmem:[#allocation2 + $0x1e0] sm:$0xff]
    %v90 = vld [vmem:[#allocation2 + $0x1e8] sm:$0xff]
    %v91 = vld [vmem:[#allocation2 + $0x1f0] sm:$0xff]
    %v92 = vld [vmem:[#allocation2 + $0x1f8] sm:$0xff]
    %v93 = vadd.f32 %v29, %v30
    %94 = vadd.xlane.f32.xlu0 %v93
    %v95 = vpop.xlane.xlu0 %94
    %v96 = vadd.f32 %v31, %v32
    %97 = vadd.xlane.f32.xlu0 %v96
    %v98 = vpop.xlane.xlu0 %97
    %v99 = vadd.f32 %v33, %v34
    %100 = vadd.xlane.f32.xlu0 %v99
    %v101 = vpop.xlane.xlu0 %100
    %v102 = vadd.f32 %v35, %v36
    %103 = vadd.xlane.f32.xlu0 %v102
    %v104 = vpop.xlane.xlu0 %103
    %v105 = vadd.f32 %v37, %v38
    %106 = vadd.xlane.f32.xlu0 %v105
    %v107 = vpop.xlane.xlu0 %106
    %v108 = vadd.f32 %v39, %v40
    %109 = vadd.xlane.f32.xlu0 %v108
    %v110 = vpop.xlane.xlu0 %109
    %v111 = vadd.f32 %v41, %v42
    %112 = vadd.xlane.f32.xlu0 %v111
    %v113 = vpop.xlane.xlu0 %112
    %v114 = vadd.f32 %v43, %v44
    %115 = vadd.xlane.f32.xlu0 %v114
    %v116 = vpop.xlane.xlu0 %115
    %v117 = vadd.f32 %v45, %v46
    %118 = vadd.xlane.f32.xlu0 %v117
    %v119 = vpop.xlane.xlu0 %118
    %v120 = vadd.f32 %v47, %v48
    %121 = vadd.xlane.f32.xlu0 %v120
    %v122 = vpop.xlane.xlu0 %121
    %v123 = vadd.f32 %v49, %v50
    %124 = vadd.xlane.f32.xlu0 %v123
    %v125 = vpop.xlane.xlu0 %124
    %v126 = vadd.f32 %v51, %v52
    %127 = vadd.xlane.f32.xlu0 %v126
    %v128 = vpop.xlane.xlu0 %127
    %v129 = vadd.f32 %v53, %v54
    %130 = vadd.xlane.f32.xlu0 %v129
    %v131 = vpop.xlane.xlu0 %130
    %v132 = vadd.f32 %v55, %v56
    %133 = vadd.xlane.f32.xlu0 %v132
    %v134 = vpop.xlane.xlu0 %133
    %v135 = vadd.f32 %v57, %v58
    %136 = vadd.xlane.f32.xlu0 %v135
    %v137 = vpop.xlane.xlu0 %136
    %v138 = vadd.f32 %v59, %v60
    %139 = vadd.xlane.f32.xlu0 %v138
    %v140 = vpop.xlane.xlu0 %139
    %v141 = vadd.f32 %v61, %v62
    %142 = vadd.xlane.f32.xlu0 %v141
    %v143 = vpop.xlane.xlu0 %142
    %v144 = vadd.f32 %v63, %v64
    %145 = vadd.xlane.f32.xlu0 %v144
    %v146 = vpop.xlane.xlu0 %145
    %v147 = vadd.f32 %v65, %v66
    %148 = vadd.xlane.f32.xlu0 %v147
    %v149 = vpop.xlane.xlu0 %148
    %v150 = vadd.f32 %v67, %v68
    %151 = vadd.xlane.f32.xlu0 %v150
    %v152 = vpop.xlane.xlu0 %151
    %v153 = vadd.f32 %v69, %v70
    %154 = vadd.xlane.f32.xlu0 %v153
    %v155 = vpop.xlane.xlu0 %154
    %v156 = vadd.f32 %v71, %v72
    %157 = vadd.xlane.f32.xlu0 %v156
    %v158 = vpop.xlane.xlu0 %157
    %v159 = vadd.f32 %v73, %v74
    %160 = vadd.xlane.f32.xlu0 %v159
    %v161 = vpop.xlane.xlu0 %160
    %v162 = vadd.f32 %v75, %v76
    %163 = vadd.xlane.f32.xlu0 %v162
    %v164 = vpop.xlane.xlu0 %163
    %v165 = vadd.f32 %v77, %v78
    %166 = vadd.xlane.f32.xlu0 %v165
    %v167 = vpop.xlane.xlu0 %166
    %v168 = vadd.f32 %v79, %v80
    %169 = vadd.xlane.f32.xlu0 %v168
    %v170 = vpop.xlane.xlu0 %169
    %v171 = vadd.f32 %v81, %v82
    %172 = vadd.xlane.f32.xlu0 %v171
    %v173 = vpop.xlane.xlu0 %172
    %v174 = vadd.f32 %v83, %v84
    %175 = vadd.xlane.f32.xlu0 %v174
    %v176 = vpop.xlane.xlu0 %175
    %v177 = vadd.f32 %v85, %v86
    %178 = vadd.xlane.f32.xlu0 %v177
    %v179 = vpop.xlane.xlu0 %178
    %v180 = vadd.f32 %v87, %v88
    %181 = vadd.xlane.f32.xlu0 %v180
    %v182 = vpop.xlane.xlu0 %181
    %v183 = vadd.f32 %v89, %v90
    %184 = vadd.xlane.f32.xlu0 %v183
    %v185 = vpop.xlane.xlu0 %184
    %v186 = vadd.f32 %v91, %v92
    %187 = vadd.xlane.f32.xlu0 %v186
    %v188 = vpop.xlane.xlu0 %187
    %v189 = vrcp.pop 256.0
    %v190 = vmul.f32 %v95, %v189
    %v191 = vmul.f32 %v98, %v189
    %v192 = vmul.f32 %v101, %v189
    %v193 = vmul.f32 %v104, %v189
    %v194 = vmul.f32 %v107, %v189
    %v195 = vmul.f32 %v110, %v189
    %v196 = vmul.f32 %v113, %v189
    %v197 = vmul.f32 %v116, %v189
    %v198 = vmul.f32 %v119, %v189
    %v199 = vmul.f32 %v122, %v189
    %v200 = vmul.f32 %v125, %v189
    %v201 = vmul.f32 %v128, %v189
    %v202 = vmul.f32 %v131, %v189
    %v203 = vmul.f32 %v134, %v189
    %v204 = vmul.f32 %v137, %v189
    %v205 = vmul.f32 %v140, %v189
    %v206 = vmul.f32 %v143, %v189
    %v207 = vmul.f32 %v146, %v189
    %v208 = vmul.f32 %v149, %v189
    %v209 = vmul.f32 %v152, %v189
    %v210 = vmul.f32 %v155, %v189
    %v211 = vmul.f32 %v158, %v189
    %v212 = vmul.f32 %v161, %v189
    %v213 = vmul.f32 %v164, %v189
    %v214 = vmul.f32 %v167, %v189
    %v215 = vmul.f32 %v170, %v189
    %v216 = vmul.f32 %v173, %v189
    %v217 = vmul.f32 %v176, %v189
    %v218 = vmul.f32 %v179, %v189
    %v219 = vmul.f32 %v182, %v189
    %v220 = vmul.f32 %v185, %v189
    %v221 = vmul.f32 %v188, %v189
    %v222 = vsub.f32 %v29, %v190
    %v223 = vsub.f32 %v30, %v190
    %v224 = vsub.f32 %v31, %v191
    %v225 = vsub.f32 %v32, %v191
    %v226 = vsub.f32 %v33, %v192
    %v227 = vsub.f32 %v34, %v192
    %v228 = vsub.f32 %v35, %v193
    %v229 = vsub.f32 %v36, %v193
    %v230 = vsub.f32 %v37, %v194
    %v231 = vsub.f32 %v38, %v194
    %v232 = vsub.f32 %v39, %v195
    %v233 = vsub.f32 %v40, %v195
    %v234 = vsub.f32 %v41, %v196
    %v235 = vsub.f32 %v42, %v196
    %v236 = vsub.f32 %v43, %v197
    %v237 = vsub.f32 %v44, %v197
    %v238 = vsub.f32 %v45, %v198
    %v239 = vsub.f32 %v46, %v198
    %v240 = vsub.f32 %v47, %v199
    %v241 = vsub.f32 %v48, %v199
    %v242 = vsub.f32 %v49, %v200
    %v243 = vsub.f32 %v50, %v200
    %v244 = vsub.f32 %v51, %v201
    %v245 = vsub.f32 %v52, %v201
    %v246 = vsub.f32 %v53, %v202
    %v247 = vsub.f32 %v54, %v202
    %v248 = vsub.f32 %v55, %v203
    %v249 = vsub.f32 %v56, %v203
    %v250 = vsub.f32 %v57, %v204
    %v251 = vsub.f32 %v58, %v204
    %v252 = vsub.f32 %v59, %v205
    %v253 = vsub.f32 %v60, %v205
    %v254 = vsub.f32 %v61, %v206
    %v255 = vsub.f32 %v62, %v206
    %v256 = vsub.f32 %v63, %v207
    %v257 = vsub.f32 %v64, %v207
    %v258 = vsub.f32 %v65, %v208
    %v259 = vsub.f32 %v66, %v208
    %v260 = vsub.f32 %v67, %v209
    %v261 = vsub.f32 %v68, %v209
    %v262 = vsub.f32 %v69, %v210
    %v263 = vsub.f32 %v70, %v210
    %v264 = vsub.f32 %v71, %v211
    %v265 = vsub.f32 %v72, %v211
    %v266 = vsub.f32 %v73, %v212
    %v267 = vsub.f32 %v74, %v212
    %v268 = vsub.f32 %v75, %v213
    %v269 = vsub.f32 %v76, %v213
    %v270 = vsub.f32 %v77, %v214
    %v271 = vsub.f32 %v78, %v214
    %v272 = vsub.f32 %v79, %v215
    %v273 = vsub.f32 %v80, %v215
    %v274 = vsub.f32 %v81, %v216
    %v275 = vsub.f32 %v82, %v216
    %v276 = vsub.f32 %v83, %v217
    %v277 = vsub.f32 %v84, %v217
    %v278 = vsub.f32 %v85, %v218
    %v279 = vsub.f32 %v86, %v218
    %v280 = vsub.f32 %v87, %v219
    %v281 = vsub.f32 %v88, %v219
    %v282 = vsub.f32 %v89, %v220
    %v283 = vsub.f32 %v90, %v220
    %v284 = vsub.f32 %v91, %v221
    %v285 = vsub.f32 %v92, %v221
    %v286 = vmul.f32 %v222, %v222
    %v287 = vmul.f32 %v223, %v223
    %v288 = vmul.f32 %v224, %v224
    %v289 = vmul.f32 %v225, %v225
    %v290 = vmul.f32 %v226, %v226
    %v291 = vmul.f32 %v227, %v227
    %v292 = vmul.f32 %v228, %v228
    %v293 = vmul.f32 %v229, %v229
    %v294 = vmul.f32 %v230, %v230
    %v295 = vmul.f32 %v231, %v231
    %v296 = vmul.f32 %v232, %v232
    %v297 = vmul.f32 %v233, %v233
    %v298 = vmul.f32 %v234, %v234
    %v299 = vmul.f32 %v235, %v235
    %v300 = vmul.f32 %v236, %v236
    %v301 = vmul.f32 %v237, %v237
    %v302 = vmul.f32 %v238, %v238
    %v303 = vmul.f32 %v239, %v239
    %v304 = vmul.f32 %v240, %v240
    %v305 = vmul.f32 %v241, %v241
    %v306 = vmul.f32 %v242, %v242
    %v307 = vmul.f32 %v243, %v243
    %v308 = vmul.f32 %v244, %v244
    %v309 = vmul.f32 %v245, %v245
    %v310 = vmul.f32 %v246, %v246
    %v311 = vmul.f32 %v247, %v247
    %v312 = vmul.f32 %v248, %v248
    %v313 = vmul.f32 %v249, %v249
    %v314 = vmul.f32 %v250, %v250
    %v315 = vmul.f32 %v251, %v251
    %v316 = vmul.f32 %v252, %v252
    %v317 = vmul.f32 %v253, %v253
    %v318 = vmul.f32 %v254, %v254
    %v319 = vmul.f32 %v255, %v255
    %v320 = vmul.f32 %v256, %v256
    %v321 = vmul.f32 %v257, %v257
    %v322 = vmul.f32 %v258, %v258
    %v323 = vmul.f32 %v259, %v259
    %v324 = vmul.f32 %v260, %v260
    %v325 = vmul.f32 %v261, %v261
    %v326 = vmul.f32 %v262, %v262
    %v327 = vmul.f32 %v263, %v263
    %v328 = vmul.f32 %v264, %v264
    %v329 = vmul.f32 %v265, %v265
    %v330 = vmul.f32 %v266, %v266
    %v331 = vmul.f32 %v267, %v267
    %v332 = vmul.f32 %v268, %v268
    %v333 = vmul.f32 %v269, %v269
    %v334 = vmul.f32 %v270, %v270
    %v335 = vmul.f32 %v271, %v271
    %v336 = vmul.f32 %v272, %v272
    %v337 = vmul.f32 %v273, %v273
    %v338 = vmul.f32 %v274, %v274
    %v339 = vmul.f32 %v275, %v275
    %v340 = vmul.f32 %v276, %v276
    %v341 = vmul.f32 %v277, %v277
    %v342 = vmul.f32 %v278, %v278
    %v343 = vmul.f32 %v279, %v279
    %v344 = vmul.f32 %v280, %v280
    %v345 = vmul.f32 %v281, %v281
    %v346 = vmul.f32 %v282, %v282
    %v347 = vmul.f32 %v283, %v283
    %v348 = vmul.f32 %v284, %v284
    %v349 = vmul.f32 %v285, %v285
    %v350 = vadd.f32 %v286, %v287
    %351 = vadd.xlane.f32.xlu0 %v350
    %v352 = vpop.xlane.xlu0 %351
    %v353 = vadd.f32 %v288, %v289
    %354 = vadd.xlane.f32.xlu0 %v353
    %v355 = vpop.xlane.xlu0 %354
    %v356 = vadd.f32 %v290, %v291
    %357 = vadd.xlane.f32.xlu0 %v356
    %v358 = vpop.xlane.xlu0 %357
    %v359 = vadd.f32 %v292, %v293
    %360 = vadd.xlane.f32.xlu0 %v359
    %v361 = vpop.xlane.xlu0 %360
    %v362 = vadd.f32 %v294, %v295
    %363 = vadd.xlane.f32.xlu0 %v362
    %v364 = vpop.xlane.xlu0 %363
    %v365 = vadd.f32 %v296, %v297
    %366 = vadd.xlane.f32.xlu0 %v365
    %v367 = vpop.xlane.xlu0 %366
    %v368 = vadd.f32 %v298, %v299
    %369 = vadd.xlane.f32.xlu0 %v368
    %v370 = vpop.xlane.xlu0 %369
    %v371 = vadd.f32 %v300, %v301
    %372 = vadd.xlane.f32.xlu0 %v371
    %v373 = vpop.xlane.xlu0 %372
    %v374 = vadd.f32 %v302, %v303
    %375 = vadd.xlane.f32.xlu0 %v374
    %v376 = vpop.xlane.xlu0 %375
    %v377 = vadd.f32 %v304, %v305
    %378 = vadd.xlane.f32.xlu0 %v377
    %v379 = vpop.xlane.xlu0 %378
    %v380 = vadd.f32 %v306, %v307
    %381 = vadd.xlane.f32.xlu0 %v380
    %v382 = vpop.xlane.xlu0 %381
    %v383 = vadd.f32 %v308, %v309
    %384 = vadd.xlane.f32.xlu0 %v383
    %v385 = vpop.xlane.xlu0 %384
    %v386 = vadd.f32 %v310, %v311
    %387 = vadd.xlane.f32.xlu0 %v386
    %v388 = vpop.xlane.xlu0 %387
    %v389 = vadd.f32 %v312, %v313
    %390 = vadd.xlane.f32.xlu0 %v389
    %v391 = vpop.xlane.xlu0 %390
    %v392 = vadd.f32 %v314, %v315
    %393 = vadd.xlane.f32.xlu0 %v392
    %v394 = vpop.xlane.xlu0 %393
    %v395 = vadd.f32 %v316, %v317
    %396 = vadd.xlane.f32.xlu0 %v395
    %v397 = vpop.xlane.xlu0 %396
    %v398 = vadd.f32 %v318, %v319
    %399 = vadd.xlane.f32.xlu0 %v398
    %v400 = vpop.xlane.xlu0 %399
    %v401 = vadd.f32 %v320, %v321
    %402 = vadd.xlane.f32.xlu0 %v401
    %v403 = vpop.xlane.xlu0 %402
    %v404 = vadd.f32 %v322, %v323
    %405 = vadd.xlane.f32.xlu0 %v404
    %v406 = vpop.xlane.xlu0 %405
    %v407 = vadd.f32 %v324, %v325
    %408 = vadd.xlane.f32.xlu0 %v407
    %v409 = vpop.xlane.xlu0 %408
    %v410 = vadd.f32 %v326, %v327
    %411 = vadd.xlane.f32.xlu0 %v410
    %v412 = vpop.xlane.xlu0 %411
    %v413 = vadd.f32 %v328, %v329
    %414 = vadd.xlane.f32.xlu0 %v413
    %v415 = vpop.xlane.xlu0 %414
    %v416 = vadd.f32 %v330, %v331
    %417 = vadd.xlane.f32.xlu0 %v416
    %v418 = vpop.xlane.xlu0 %417
    %v419 = vadd.f32 %v332, %v333
    %420 = vadd.xlane.f32.xlu0 %v419
    %v421 = vpop.xlane.xlu0 %420
    %v422 = vadd.f32 %v334, %v335
    %423 = vadd.xlane.f32.xlu0 %v422
    %v424 = vpop.xlane.xlu0 %423
    %v425 = vadd.f32 %v336, %v337
    %426 = vadd.xlane.f32.xlu0 %v425
    %v427 = vpop.xlane.xlu0 %426
    %v428 = vadd.f32 %v338, %v339
    %429 = vadd.xlane.f32.xlu0 %v428
    %v430 = vpop.xlane.xlu0 %429
    %v431 = vadd.f32 %v340, %v341
    %432 = vadd.xlane.f32.xlu0 %v431
    %v433 = vpop.xlane.xlu0 %432
    %v434 = vadd.f32 %v342, %v343
    %435 = vadd.xlane.f32.xlu0 %v434
    %v436 = vpop.xlane.xlu0 %435
    %v437 = vadd.f32 %v344, %v345
    %438 = vadd.xlane.f32.xlu0 %v437
    %v439 = vpop.xlane.xlu0 %438
    %v440 = vadd.f32 %v346, %v347
    %441 = vadd.xlane.f32.xlu0 %v440
    %v442 = vpop.xlane.xlu0 %441
    %v443 = vadd.f32 %v348, %v349
    %444 = vadd.xlane.f32.xlu0 %v443
    %v445 = vpop.xlane.xlu0 %444
    %v446 = vmul.f32 %v352, %v189
    %v447 = vmul.f32 %v355, %v189
    %v448 = vmul.f32 %v358, %v189
    %v449 = vmul.f32 %v361, %v189
    %v450 = vmul.f32 %v364, %v189
    %v451 = vmul.f32 %v367, %v189
    %v452 = vmul.f32 %v370, %v189
    %v453 = vmul.f32 %v373, %v189
    %v454 = vmul.f32 %v376, %v189
    %v455 = vmul.f32 %v379, %v189
    %v456 = vmul.f32 %v382, %v189
    %v457 = vmul.f32 %v385, %v189
    %v458 = vmul.f32 %v388, %v189
    %v459 = vmul.f32 %v391, %v189
    %v460 = vmul.f32 %v394, %v189
    %v461 = vmul.f32 %v397, %v189
    %v462 = vmul.f32 %v400, %v189
    %v463 = vmul.f32 %v403, %v189
    %v464 = vmul.f32 %v406, %v189
    %v465 = vmul.f32 %v409, %v189
    %v466 = vmul.f32 %v412, %v189
    %v467 = vmul.f32 %v415, %v189
    %v468 = vmul.f32 %v418, %v189
    %v469 = vmul.f32 %v421, %v189
    %v470 = vmul.f32 %v424, %v189
    %v471 = vmul.f32 %v427, %v189
    %v472 = vmul.f32 %v430, %v189
    %v473 = vmul.f32 %v433, %v189
    %v474 = vmul.f32 %v436, %v189
    %v475 = vmul.f32 %v439, %v189
    %v476 = vmul.f32 %v442, %v189
    %v477 = vmul.f32 %v445, %v189
    %v478 = vadd.f32 %v446, 1e-05
    %v479 = vadd.f32 %v447, 1e-05
    %v480 = vadd.f32 %v448, 1e-05
    %v481 = vadd.f32 %v449, 1e-05
    %v482 = vadd.f32 %v450, 1e-05
    %v483 = vadd.f32 %v451, 1e-05
    %v484 = vadd.f32 %v452, 1e-05
    %v485 = vadd.f32 %v453, 1e-05
    %v486 = vadd.f32 %v454, 1e-05
    %v487 = vadd.f32 %v455, 1e-05
    %v488 = vadd.f32 %v456, 1e-05
    %v489 = vadd.f32 %v457, 1e-05
    %v490 = vadd.f32 %v458, 1e-05
    %v491 = vadd.f32 %v459, 1e-05
    %v492 = vadd.f32 %v460, 1e-05
    %v493 = vadd.f32 %v461, 1e-05
    %v494 = vadd.f32 %v462, 1e-05
    %v495 = vadd.f32 %v463, 1e-05
    %v496 = vadd.f32 %v464, 1e-05
    %v497 = vadd.f32 %v465, 1e-05
    %v498 = vadd.f32 %v466, 1e-05
    %v499 = vadd.f32 %v467, 1e-05
    %v500 = vadd.f32 %v468, 1e-05
    %v501 = vadd.f32 %v469, 1e-05
    %v502 = vadd.f32 %v470, 1e-05
    %v503 = vadd.f32 %v471, 1e-05
    %v504 = vadd.f32 %v472, 1e-05
    %v505 = vadd.f32 %v473, 1e-05
    %v506 = vadd.f32 %v474, 1e-05
    %v507 = vadd.f32 %v475, 1e-05
    %v508 = vadd.f32 %v476, 1e-05
    %v509 = vadd.f32 %v477, 1e-05
    %v510 = vrsqrt.pop %v478
    %v511 = vrsqrt.pop %v479
    %v512 = vrsqrt.pop %v480
    %v513 = vrsqrt.pop %v481
    %v514 = vrsqrt.pop %v482
    %v515 = vrsqrt.pop %v483
    %v516 = vrsqrt.pop %v484
    %v517 = vrsqrt.pop %v485
    %v518 = vrsqrt.pop %v486
    %v519 = vrsqrt.pop %v487
    %v520 = vrsqrt.pop %v488
    %v521 = vrsqrt.pop %v489
    %v522 = vrsqrt.pop %v490
    %v523 = vrsqrt.pop %v491
    %v524 = vrsqrt.pop %v492
    %v525 = vrsqrt.pop %v493
    %v526 = vrsqrt.pop %v494
    %v527 = vrsqrt.pop %v495
    %v528 = vrsqrt.pop %v496
    %v529 = vrsqrt.pop %v497
    %v530 = vrsqrt.pop %v498
    %v531 = vrsqrt.pop %v499
    %v532 = vrsqrt.pop %v500
    %v533 = vrsqrt.pop %v501
    %v534 = vrsqrt.pop %v502
    %v535 = vrsqrt.pop %v503
    %v536 = vrsqrt.pop %v504
    %v537 = vrsqrt.pop %v505
    %v538 = vrsqrt.pop %v506
    %v539 = vrsqrt.pop %v507
    %v540 = vrsqrt.pop %v508
    %v541 = vrsqrt.pop %v509
    %v542 = vmul.f32 %v222, %v510
    %v543 = vmul.f32 %v223, %v510
    %v544 = vmul.f32 %v224, %v511
    %v545 = vmul.f32 %v225, %v511
    %v546 = vmul.f32 %v226, %v512
    %v547 = vmul.f32 %v227, %v512
    %v548 = vmul.f32 %v228, %v513
    %v549 = vmul.f32 %v229, %v513
    %v550 = vmul.f32 %v230, %v514
    %v551 = vmul.f32 %v231, %v514
    %v552 = vmul.f32 %v232, %v515
    %v553 = vmul.f32 %v233, %v515
    %v554 = vmul.f32 %v234, %v516
    %v555 = vmul.f32 %v235, %v516
    %v556 = vmul.f32 %v236, %v517
    %v557 = vmul.f32 %v237, %v517
    %v558 = vmul.f32 %v238, %v518
    %v559 = vmul.f32 %v239, %v518
    %v560 = vmul.f32 %v240, %v519
    %v561 = vmul.f32 %v241, %v519
    %v562 = vmul.f32 %v242, %v520
    %v563 = vmul.f32 %v243, %v520
    %v564 = vmul.f32 %v244, %v521
    %v565 = vmul.f32 %v245, %v521
    %v566 = vmul.f32 %v246, %v522
    %v567 = vmul.f32 %v247, %v522
    %v568 = vmul.f32 %v248, %v523
    %v569 = vmul.f32 %v249, %v523
    %v570 = vmul.f32 %v250, %v524
    %v571 = vmul.f32 %v251, %v524
    %v572 = vmul.f32 %v252, %v525
    %v573 = vmul.f32 %v253, %v525
    %v574 = vmul.f32 %v254, %v526
    %v575 = vmul.f32 %v255, %v526
    %v576 = vmul.f32 %v256, %v527
    %v577 = vmul.f32 %v257, %v527
    %v578 = vmul.f32 %v258, %v528
    %v579 = vmul.f32 %v259, %v528
    %v580 = vmul.f32 %v260, %v529
    %v581 = vmul.f32 %v261, %v529
    %v582 = vmul.f32 %v262, %v530
    %v583 = vmul.f32 %v263, %v530
    %v584 = vmul.f32 %v264, %v531
    %v585 = vmul.f32 %v265, %v531
    %v586 = vmul.f32 %v266, %v532
    %v587 = vmul.f32 %v267, %v532
    %v588 = vmul.f32 %v268, %v533
    %v589 = vmul.f32 %v269, %v533
    %v590 = vmul.f32 %v270, %v534
    %v591 = vmul.f32 %v271, %v534
    %v592 = vmul.f32 %v272, %v535
    %v593 = vmul.f32 %v273, %v535
    %v594 = vmul.f32 %v274, %v536
    %v595 = vmul.f32 %v275, %v536
    %v596 = vmul.f32 %v276, %v537
    %v597 = vmul.f32 %v277, %v537
    %v598 = vmul.f32 %v278, %v538
    %v599 = vmul.f32 %v279, %v538
    %v600 = vmul.f32 %v280, %v539
    %v601 = vmul.f32 %v281, %v539
    %v602 = vmul.f32 %v282, %v540
    %v603 = vmul.f32 %v283, %v540
    %v604 = vmul.f32 %v284, %v541
    %v605 = vmul.f32 %v285, %v541
    %v606 = vld [vmem:[%s1] sm:$0x3]
    %v608 = vlaneseq
    %v609 = vshrl.u32 %v608, 7
    %v610 = vsub.s32 0, %v609
    %v611 = vrot.slane %v606, %v610
    %v612 = vlaneseq
    %v613 = vshrl.u32 %v612, 7
    %v614 = vsub.s32 1, %v613
    %v615 = vrot.slane %v606, %v614
    %v618 = vmul.f32 %v542, %v611
    %v619 = vmul.f32 %v543, %v615
    %v620 = vmul.f32 %v544, %v611
    %v621 = vmul.f32 %v545, %v615
    %v622 = vmul.f32 %v546, %v611
    %v623 = vmul.f32 %v547, %v615
    %v624 = vmul.f32 %v548, %v611
    %v625 = vmul.f32 %v549, %v615
    %v626 = vmul.f32 %v550, %v611
    %v627 = vmul.f32 %v551, %v615
    %v628 = vmul.f32 %v552, %v611
    %v629 = vmul.f32 %v553, %v615
    %v630 = vmul.f32 %v554, %v611
    %v631 = vmul.f32 %v555, %v615
    %v632 = vmul.f32 %v556, %v611
    %v633 = vmul.f32 %v557, %v615
    %v634 = vmul.f32 %v558, %v611
    %v635 = vmul.f32 %v559, %v615
    %v636 = vmul.f32 %v560, %v611
    %v637 = vmul.f32 %v561, %v615
    %v638 = vmul.f32 %v562, %v611
    %v639 = vmul.f32 %v563, %v615
    %v640 = vmul.f32 %v564, %v611
    %v641 = vmul.f32 %v565, %v615
    %v642 = vmul.f32 %v566, %v611
    %v643 = vmul.f32 %v567, %v615
    %v644 = vmul.f32 %v568, %v611
    %v645 = vmul.f32 %v569, %v615
    %v646 = vmul.f32 %v570, %v611
    %v647 = vmul.f32 %v571, %v615
    %v648 = vmul.f32 %v572, %v611
    %v649 = vmul.f32 %v573, %v615
    %v650 = vmul.f32 %v574, %v611
    %v651 = vmul.f32 %v575, %v615
    %v652 = vmul.f32 %v576, %v611
    %v653 = vmul.f32 %v577, %v615
    %v654 = vmul.f32 %v578, %v611
    %v655 = vmul.f32 %v579, %v615
    %v656 = vmul.f32 %v580, %v611
    %v657 = vmul.f32 %v581, %v615
    %v658 = vmul.f32 %v582, %v611
    %v659 = vmul.f32 %v583, %v615
    %v660 = vmul.f32 %v584, %v611
    %v661 = vmul.f32 %v585, %v615
    %v662 = vmul.f32 %v586, %v611
    %v663 = vmul.f32 %v587, %v615
    %v664 = vmul.f32 %v588, %v611
    %v665 = vmul.f32 %v589, %v615
    %v666 = vmul.f32 %v590, %v611
    %v667 = vmul.f32 %v591, %v615
    %v668 = vmul.f32 %v592, %v611
    %v669 = vmul.f32 %v593, %v615
    %v670 = vmul.f32 %v594, %v611
    %v671 = vmul.f32 %v595, %v615
    %v672 = vmul.f32 %v596, %v611
    %v673 = vmul.f32 %v597, %v615
    %v674 = vmul.f32 %v598, %v611
    %v675 = vmul.f32 %v599, %v615
    %v676 = vmul.f32 %v600, %v611
    %v677 = vmul.f32 %v601, %v615
    %v678 = vmul.f32 %v602, %v611
    %v679 = vmul.f32 %v603, %v615
    %v680 = vmul.f32 %v604, %v611
    %v681 = vmul.f32 %v605, %v615
    %v682 = vld [vmem:[%s2] sm:$0x3]
    %v684 = vlaneseq
    %v685 = vshrl.u32 %v684, 7
    %v686 = vsub.s32 0, %v685
    %v687 = vrot.slane %v682, %v686
    %v688 = vlaneseq
    %v689 = vshrl.u32 %v688, 7
    %v690 = vsub.s32 1, %v689
    %v691 = vrot.slane %v682, %v690
    %v694 = vadd.f32 %v618, %v687
    %v695 = vadd.f32 %v619, %v691
    %v696 = vadd.f32 %v620, %v687
    %v697 = vadd.f32 %v621, %v691
    %v698 = vadd.f32 %v622, %v687
    %v699 = vadd.f32 %v623, %v691
    %v700 = vadd.f32 %v624, %v687
    %v701 = vadd.f32 %v625, %v691
    %v702 = vadd.f32 %v626, %v687
    %v703 = vadd.f32 %v627, %v691
    %v704 = vadd.f32 %v628, %v687
    %v705 = vadd.f32 %v629, %v691
    %v706 = vadd.f32 %v630, %v687
    %v707 = vadd.f32 %v631, %v691
    %v708 = vadd.f32 %v632, %v687
    %v709 = vadd.f32 %v633, %v691
    %v710 = vadd.f32 %v634, %v687
    %v711 = vadd.f32 %v635, %v691
    %v712 = vadd.f32 %v636, %v687
    %v713 = vadd.f32 %v637, %v691
    %v714 = vadd.f32 %v638, %v687
    %v715 = vadd.f32 %v639, %v691
    %v716 = vadd.f32 %v640, %v687
    %v717 = vadd.f32 %v641, %v691
    %v718 = vadd.f32 %v642, %v687
    %v719 = vadd.f32 %v643, %v691
    %v720 = vadd.f32 %v644, %v687
    %v721 = vadd.f32 %v645, %v691
    %v722 = vadd.f32 %v646, %v687
    %v723 = vadd.f32 %v647, %v691
    %v724 = vadd.f32 %v648, %v687
    %v725 = vadd.f32 %v649, %v691
    %v726 = vadd.f32 %v650, %v687
    %v727 = vadd.f32 %v651, %v691
    %v728 = vadd.f32 %v652, %v687
    %v729 = vadd.f32 %v653, %v691
    %v730 = vadd.f32 %v654, %v687
    %v731 = vadd.f32 %v655, %v691
    %v732 = vadd.f32 %v656, %v687
    %v733 = vadd.f32 %v657, %v691
    %v734 = vadd.f32 %v658, %v687
    %v735 = vadd.f32 %v659, %v691
    %v736 = vadd.f32 %v660, %v687
    %v737 = vadd.f32 %v661, %v691
    %v738 = vadd.f32 %v662, %v687
    %v739 = vadd.f32 %v663, %v691
    %v740 = vadd.f32 %v664, %v687
    %v741 = vadd.f32 %v665, %v691
    %v742 = vadd.f32 %v666, %v687
    %v743 = vadd.f32 %v667, %v691
    %v744 = vadd.f32 %v668, %v687
    %v745 = vadd.f32 %v669, %v691
    %v746 = vadd.f32 %v670, %v687
    %v747 = vadd.f32 %v671, %v691
    %v748 = vadd.f32 %v672, %v687
    %v749 = vadd.f32 %v673, %v691
    %v750 = vadd.f32 %v674, %v687
    %v751 = vadd.f32 %v675, %v691
    %v752 = vadd.f32 %v676, %v687
    %v753 = vadd.f32 %v677, %v691
    %v754 = vadd.f32 %v678, %v687
    %v755 = vadd.f32 %v679, %v691
    %v756 = vadd.f32 %v680, %v687
    %v757 = vadd.f32 %v681, %v691
    %758 = vst [vmem:[#allocation5] sm:$0xff] %v694
    %759 = vst [vmem:[#allocation5 + $0x8] sm:$0xff] %v695
    %760 = vst [vmem:[#allocation5 + $0x10] sm:$0xff] %v696
    %761 = vst [vmem:[#allocation5 + $0x18] sm:$0xff] %v697
    %762 = vst [vmem:[#allocation5 + $0x20] sm:$0xff] %v698
    %763 = vst [vmem:[#allocation5 + $0x28] sm:$0xff] %v699
    %764 = vst [vmem:[#allocation5 + $0x30] sm:$0xff] %v700
    %765 = vst [vmem:[#allocation5 + $0x38] sm:$0xff] %v701
    %766 = vst [vmem:[#allocation5 + $0x40] sm:$0xff] %v702
    %767 = vst [vmem:[#allocation5 + $0x48] sm:$0xff] %v703
    %768 = vst [vmem:[#allocation5 + $0x50] sm:$0xff] %v704
    %769 = vst [vmem:[#allocation5 + $0x58] sm:$0xff] %v705
    %770 = vst [vmem:[#allocation5 + $0x60] sm:$0xff] %v706
    %771 = vst [vmem:[#allocation5 + $0x68] sm:$0xff] %v707
    %772 = vst [vmem:[#allocation5 + $0x70] sm:$0xff] %v708
    %773 = vst [vmem:[#allocation5 + $0x78] sm:$0xff] %v709
    %774 = vst [vmem:[#allocation5 + $0x80] sm:$0xff] %v710
    %775 = vst [vmem:[#allocation5 + $0x88] sm:$0xff] %v711
    %776 = vst [vmem:[#allocation5 + $0x90] sm:$0xff] %v712
    %777 = vst [vmem:[#allocation5 + $0x98] sm:$0xff] %v713
    %778 = vst [vmem:[#allocation5 + $0xa0] sm:$0xff] %v714
    %779 = vst [vmem:[#allocation5 + $0xa8] sm:$0xff] %v715
    %780 = vst [vmem:[#allocation5 + $0xb0] sm:$0xff] %v716
    %781 = vst [vmem:[#allocation5 + $0xb8] sm:$0xff] %v717
    %782 = vst [vmem:[#allocation5 + $0xc0] sm:$0xff] %v718
    %783 = vst [vmem:[#allocation5 + $0xc8] sm:$0xff] %v719
    %784 = vst [vmem:[#allocation5 + $0xd0] sm:$0xff] %v720
    %785 = vst [vmem:[#allocation5 + $0xd8] sm:$0xff] %v721
    %786 = vst [vmem:[#allocation5 + $0xe0] sm:$0xff] %v722
    %787 = vst [vmem:[#allocation5 + $0xe8] sm:$0xff] %v723
    %788 = vst [vmem:[#allocation5 + $0xf0] sm:$0xff] %v724
    %789 = vst [vmem:[#allocation5 + $0xf8] sm:$0xff] %v725
    %790 = vst [vmem:[#allocation5 + $0x100] sm:$0xff] %v726
    %791 = vst [vmem:[#allocation5 + $0x108] sm:$0xff] %v727
    %792 = vst [vmem:[#allocation5 + $0x110] sm:$0xff] %v728
    %793 = vst [vmem:[#allocation5 + $0x118] sm:$0xff] %v729
    %794 = vst [vmem:[#allocation5 + $0x120] sm:$0xff] %v730
    %795 = vst [vmem:[#allocation5 + $0x128] sm:$0xff] %v731
    %796 = vst [vmem:[#allocation5 + $0x130] sm:$0xff] %v732
    %797 = vst [vmem:[#allocation5 + $0x138] sm:$0xff] %v733
    %798 = vst [vmem:[#allocation5 + $0x140] sm:$0xff] %v734
    %799 = vst [vmem:[#allocation5 + $0x148] sm:$0xff] %v735
    %800 = vst [vmem:[#allocation5 + $0x150] sm:$0xff] %v736
    %801 = vst [vmem:[#allocation5 + $0x158] sm:$0xff] %v737
    %802 = vst [vmem:[#allocation5 + $0x160] sm:$0xff] %v738
    %803 = vst [vmem:[#allocation5 + $0x168] sm:$0xff] %v739
    %804 = vst [vmem:[#allocation5 + $0x170] sm:$0xff] %v740
    %805 = vst [vmem:[#allocation5 + $0x178] sm:$0xff] %v741
    %806 = vst [vmem:[#allocation5 + $0x180] sm:$0xff] %v742
    %807 = vst [vmem:[#allocation5 + $0x188] sm:$0xff] %v743
    %808 = vst [vmem:[#allocation5 + $0x190] sm:$0xff] %v744
    %809 = vst [vmem:[#allocation5 + $0x198] sm:$0xff] %v745
    %810 = vst [vmem:[#allocation5 + $0x1a0] sm:$0xff] %v746
    %811 = vst [vmem:[#allocation5 + $0x1a8] sm:$0xff] %v747
    %812 = vst [vmem:[#allocation5 + $0x1b0] sm:$0xff] %v748
    %813 = vst [vmem:[#allocation5 + $0x1b8] sm:$0xff] %v749
    %814 = vst [vmem:[#allocation5 + $0x1c0] sm:$0xff] %v750
    %815 = vst [vmem:[#allocation5 + $0x1c8] sm:$0xff] %v751
    %816 = vst [vmem:[#allocation5 + $0x1d0] sm:$0xff] %v752
    %817 = vst [vmem:[#allocation5 + $0x1d8] sm:$0xff] %v753
    %818 = vst [vmem:[#allocation5 + $0x1e0] sm:$0xff] %v754
    %819 = vst [vmem:[#allocation5 + $0x1e8] sm:$0xff] %v755
    %820 = vst [vmem:[#allocation5 + $0x1f0] sm:$0xff] %v756
    %821 = vst [vmem:[#allocation5 + $0x1f8] sm:$0xff] %v757
    // Predicated region
    $region18: #{layer_norm_pallas.1} parent=1 // pred_check
      _
    $region19: #{layer_norm_pallas.1} parent=1 // pred_check_branch
      %823 = sbr.rel (0) target = $region21
    $region20: #{layer_norm_pallas.1} parent=1 // pred_region
      %s825 = ssub.s32 8192, 8192
      %826 = vsyncadd [#allocation4], %s825
      %s827 = sshll.u32 [#allocation5], 4
      %s828 = int_to_ptr.vmem [resolvable:$true] %s827
      %833 = dma.vmem_to_hbm [thread:$0]  %s828, 8192, %s3, [#allocation4], 256, 256, 16
    $region21: #{layer_norm_pallas.1} parent=1 // pred_fallthru
      _
    // Predicated region
    $region22: #{layer_norm_pallas.1} parent=1 // pred_check
      _
    $region23: #{layer_norm_pallas.1} parent=1 // pred_check_branch
      %835 = sbr.rel (0) target = $region25
    $region24: #{layer_norm_pallas.1} parent=1 // pred_region
      %836 = dma.done [#allocation4], 8192
    $region25: #{layer_norm_pallas.1} parent=1 // pred_fallthru
      _
    %837 = vsyncpa [#allocation3], 1
    %838 = vsyncpa [#allocation4], 1

</llo_original>
